<compile_context>
chip_gen: v7x
topology: tpu7x:2x2x1
jax: 0.10.0
libtpu: 0.0.40
codegen_flags: <defaults>
</compile_context>

<pallas_src>
import functools

import numpy as np
import jax
import jax.numpy as jnp
from jax.experimental import pallas as pl
from jax.experimental.pallas import tpu as pltpu


_SQRT_HALF = 0.7071067811865476
# pywt 'db1' (Haar): dec_lo = [1/sqrt2, 1/sqrt2], dec_hi = [-1/sqrt2, 1/sqrt2]
_DB1_DEC_LO = np.array([_SQRT_HALF, _SQRT_HALF], dtype=np.float64)
_DB1_DEC_HI = np.array([-_SQRT_HALF, _SQRT_HALF], dtype=np.float64)

# Multiple of 256 so Wt/2 (the per-band output lane width) stays 128-aligned.
_WIDTH_TILE = 256


# ---------------------------------------------------------------------------
# Per-width-tile analysis filter matrices (lowpass / highpass separately)
# ---------------------------------------------------------------------------
def _afb_tile_matrices(dec_lo, dec_hi, wt):
    """Build (wt, wt//2) matrices F_lo, F_hi such that  x_tile @ F = band.
    Mirrors prep_filt_afb1d + afb1d(mode='zero') for an even-length tile:
    filters reversed, correlation, stride 2, pad_left = 0 (p = 0 for even N,
    L = 2), i.e. out[o] = sum_k x[2*o + k] * h_rev[k]."""
    h0 = np.asarray(dec_lo, dtype=np.float64)[::-1].ravel()
    h1 = np.asarray(dec_hi, dtype=np.float64)[::-1].ravel()
    L = h0.size
    wt2 = wt // 2
    flo = np.zeros((wt, wt2), dtype=np.float32)
    fhi = np.zeros((wt, wt2), dtype=np.float32)
    for o in range(wt2):
        for k in range(L):
            j = 2 * o + k
            if 0 <= j < wt:
                flo[j, o] += h0[k]
                fhi[j, o] += h1[k]
    return flo, fhi


# ---------------------------------------------------------------------------
# Pallas kernel: (channel-block, width-tile) grid step
# ---------------------------------------------------------------------------
def _dwt_haar_kernel(x_ref, wlo_ref, whi_ref, yl_ref, yh_ref, *, cb, h2, wt2):
    m2 = cb * h2

    # Height (column) Haar filter bank on the VPU: even/odd rows via
    # sublane-strided reads, combined with add/sub.
    xe = x_ref[pl.ds(0, m2, stride=2), :].astype(jnp.float32)   # (cb*H2, Wt)
    xo = x_ref[pl.ds(1, m2, stride=2), :].astype(jnp.float32)
    s = jnp.float32(_SQRT_HALF)
    col_lo = (xe + xo) * s
    col_hi = (xe - xo) * s

    # Width (row) filter bank + decimation: banded per-tile matmuls (K = Wt).
    # Separate lo/hi matrices keep every result lane-0 aligned (no lane slice).
    wlo = wlo_ref[...]                                          # (Wt, Wt2)
    whi = whi_ref[...]
    ll = jnp.dot(col_lo, wlo, preferred_element_type=jnp.float32)
    lh = jnp.dot(col_hi, wlo, preferred_element_type=jnp.float32)
    hl = jnp.dot(col_lo, whi, preferred_element_type=jnp.float32)
    hh = jnp.dot(col_hi, whi, preferred_element_type=jnp.float32)

    # yl as a flat 2-D block (no in-kernel reshape); yh in final layout.
    yl_ref[...] = ll.astype(yl_ref.dtype)
    odt = yh_ref.dtype
    yh_ref[:, 0, :, :] = lh.reshape(cb, h2, wt2).astype(odt)    # LH
    yh_ref[:, 1, :, :] = hl.reshape(cb, h2, wt2).astype(odt)    # HL
    yh_ref[:, 2, :, :] = hh.reshape(cb, h2, wt2).astype(odt)    # HH


# ---------------------------------------------------------------------------
# Tiling heuristics
# ---------------------------------------------------------------------------
def _pick_width_tile(wpad, pref=_WIDTH_TILE):
    """Width tile: pref (multiple of 256) if it divides the (even) width,
    otherwise fall back to the dense full width (small images / odd divisors)."""
    if wpad <= pref:
        return wpad
    for t in range(pref, 255, -256):
        if wpad % t == 0:
            return t
    return wpad


def _pick_channel_block(nc, h, wt, n_wtiles, itemsize, target_bytes=6 << 20):
    """Largest channel batch CB (divisor of nc) such that:
      * the (CB*H, Wt) input block and (CB*H2, Wt2) output block stay
        sublane-aligned (or full-extent),
      * the in-kernel (CB*H2, Wt2) -> (CB, H2, Wt2) split stays tile-aligned,
      * the input block fits the byte budget,
      * (preferably) >= 4 total grid steps so each v7x TensorCore gets >= 2."""
    h2 = h // 2

    def usable(d):
        if nc % d:
            return False
        if d != nc and ((d * h) % 8 or (d * h2) % 8):
            return False            # keep 2-D blocks sublane-aligned
        if d > 1 and h2 % 8:
            return False            # keep the yh sublane split free
        return True

    cand = [d for d in range(1, nc + 1) if usable(d)]
    if not cand:
        return nc                   # full extent is always a legal block
    fits = [d for d in cand if d * h * wt * itemsize <= target_bytes]
    if not fits:
        return min(cand)
    for min_steps in (4, 2, 1):
        good = [d for d in fits if (nc // d) * n_wtiles >= min_steps]
        if good:
            return max(good)
    return max(fits)


def _vmem_limit_bytes(cb, h, wt, in_itemsize, out_itemsize):
    """Per-step footprint: double-buffered DMA blocks + f32 intermediates."""
    h2, wt2 = h // 2, wt // 2
    blk_in = cb * h * wt * in_itemsize
    blk_filt = 2 * wt * wt2 * 4
    blk_out = 4 * cb * h2 * wt2 * out_itemsize         # yl + 3 yh bands
    pipeline = 2 * (blk_in + blk_filt + blk_out)
    live_f32 = 4 * cb * h2 * wt * 4 + 4 * cb * h2 * wt2 * 4
    est = int(1.25 * (pipeline + live_f32)) + (2 << 20)
    return max(24 << 20, min(est, 56 << 20))             # stay under v7x's 64 MiB


# ---------------------------------------------------------------------------
# Wrapper
# ---------------------------------------------------------------------------
def _afb2d_pallas(x_nchw):
    """Single-level 2D DWT (db1, zero padding). x_nchw: (N, C, H, W).
    Returns (yl, yh): yl (N, C, H2, W2), yh (N, C, 3, H2, W2)."""
    n, c, hin, win = x_nchw.shape
    x = x_nchw
    if not jnp.issubdtype(x.dtype, jnp.floating):
        x = x.astype(jnp.float32)
    out_dtype = x.dtype

    # 'zero' mode trailing pad for odd extents (matches afb1d for L=2).
    ph, pw = hin % 2, win % 2
    if ph or pw:
        x = jnp.pad(x, ((0, 0), (0, 0), (0, ph), (0, pw)))
    H, W = hin + ph, win + pw
    H2, W2 = H // 2, W // 2
    nc = n * c

    wt = _pick_width_tile(W)
    wt2 = wt // 2
    n_wtiles = W // wt
    assert W % wt == 0 and wt % 2 == 0

    flo_np, fhi_np = _afb_tile_matrices(_DB1_DEC_LO, _DB1_DEC_HI, wt)
    wlo = jnp.asarray(flo_np)                       # (Wt, Wt2)  lowpass
    whi = jnp.asarray(fhi_np)                       # (Wt, Wt2)  highpass

    itemsize = jnp.dtype(x.dtype).itemsize
    cb = _pick_channel_block(nc, H, wt, n_wtiles, itemsize)
    grid = (nc // cb, n_wtiles)

    x2 = x.reshape(nc * H, W)                       # free: merge leading dims

    kernel = functools.partial(_dwt_haar_kernel, cb=cb, h2=H2, wt2=wt2)
    vmem_limit = _vmem_limit_bytes(cb, H, wt, itemsize,
                                   jnp.dtype(out_dtype).itemsize)

    yl2, yh = pl.pallas_call(
        kernel,
        out_shape=(jax.ShapeDtypeStruct((nc * H2, W2), out_dtype),
                   jax.ShapeDtypeStruct((nc, 3, H2, W2), out_dtype)),
        grid=grid,
        in_specs=[
            pl.BlockSpec((cb * H, wt), lambda i, k: (i, k)),
            # grid-invariant filters: constant index_map -> DMA'd once.
            # (With width tiling they are <= 128 KiB each, so default double
            # buffering costs almost nothing -- no need for pl.Buffered(1).)
            pl.BlockSpec((wt, wt2), lambda i, k: (0, 0)),
            pl.BlockSpec((wt, wt2), lambda i, k: (0, 0)),
        ],
        out_specs=(
            pl.BlockSpec((cb * H2, wt2), lambda i, k: (i, k)),
            pl.BlockSpec((cb, 3, H2, wt2), lambda i, k: (i, 0, 0, k)),
        ),
        compiler_params=pltpu.CompilerParams(
            dimension_semantics=("parallel", "parallel"),
            vmem_limit_bytes=vmem_limit),
    )(x2, wlo, whi)

    # Free reshapes: split the leading axes back into (N, C[, H2]).
    return yl2.reshape(n, c, H2, W2), yh.reshape(n, c, 3, H2, W2)


def dwt_forward(x, J=1):
    """Equivalent of DWTForward(J=J, wave='db1', mode='zero').forward(x)."""
    yh = []
    ll = x
    for _ in range(J):
        ll, high = _afb2d_pallas(ll)
        yh.append(high)
    return ll, yh


# ---------------------------------------------------------------------------
# Pure-JAX reference (Haar / zero mode / even sizes) for sanity checks
# ---------------------------------------------------------------------------
def _haar_reference(x):
    a = x[..., 0::2, 0::2]
    b = x[..., 0::2, 1::2]
    c = x[..., 1::2, 0::2]
    d = x[..., 1::2, 1::2]
    ll = (a + b + c + d) * 0.5
    lh = (a + b - c - d) * 0.5
    hl = (a - b + c - d) * 0.5
    hh = (a - b - c + d) * 0.5
    return ll, jnp.stack([lh, hl, hh], axis=2)


if __name__ == "__main__":
    # Main test: shapes implied by the module (N, C, H, W).
    N, C, H, W = 2, 4, 16, 16
    x = jax.random.normal(jax.random.PRNGKey(0), (N, C, H, W), dtype=jnp.float32)

    yl, yh = dwt_forward(x, J=1)
    yl = jax.block_until_ready(yl)
    yh0 = jax.block_until_ready(yh[0])

    ref_ll, ref_high = _haar_reference(x)
    np.testing.assert_allclose(np.asarray(yl), np.asarray(ref_ll),
                               rtol=1e-5, atol=1e-5)
    np.testing.assert_allclose(np.asarray(yh0), np.asarray(ref_high),
                               rtol=1e-5, atol=1e-5)
    assert yl.shape == (N, C, H // 2, W // 2)
    assert yh0.shape == (N, C, 3, H // 2, W // 2)

    # Odd spatial sizes exercise the 'zero'-mode trailing-pad path.
    x_odd = jax.random.normal(jax.random.PRNGKey(1), (1, 3, 15, 13),
                              dtype=jnp.float32)
    yl_o, yh_o = dwt_forward(x_odd, J=1)
    x_pad = jnp.pad(x_odd, ((0, 0), (0, 0), (0, 1), (0, 1)))
    r_ll, r_h = _haar_reference(x_pad)
    np.testing.assert_allclose(np.asarray(jax.block_until_ready(yl_o)),
                               np.asarray(r_ll), rtol=1e-5, atol=1e-5)
    np.testing.assert_allclose(np.asarray(jax.block_until_ready(yh_o[0])),
                               np.asarray(r_h), rtol=1e-5, atol=1e-5)

    # Wide input exercises the banded width-tiled filter path (2 width tiles).
    x_wide = jax.random.normal(jax.random.PRNGKey(2), (1, 2, 16, 512),
                               dtype=jnp.float32)
    yl_w, yh_w = dwt_forward(x_wide, J=1)
    r_ll_w, r_h_w = _haar_reference(x_wide)
    np.testing.assert_allclose(np.asarray(jax.block_until_ready(yl_w)),
                               np.asarray(r_ll_w), rtol=1e-5, atol=1e-5)
    np.testing.assert_allclose(np.asarray(jax.block_until_ready(yh_w[0])),
                               np.asarray(r_h_w), rtol=1e-5, atol=1e-5)

    print("KERNEL_OK")
</pallas_src>

<mosaic_0001>
module attributes {stable_mosaic.version = 11 : i64} {
  func.func @_dwt_haar_kernel(%arg0: i32, %arg1: i32, %arg2: memref<32x16xf32, #tpu.memory_space<vmem>>, %arg3: memref<16x8xf32, #tpu.memory_space<vmem>>, %arg4: memref<16x8xf32, #tpu.memory_space<vmem>>, %arg5: memref<16x8xf32, #tpu.memory_space<vmem>>, %arg6: memref<2x3x8x8xf32, #tpu.memory_space<vmem>>) attributes {dimension_semantics = [#tpu.dimension_semantics<parallel>, #tpu.dimension_semantics<parallel>], iteration_bounds = array<i64: 4, 1>, scalar_prefetch = 0 : i64, scratch_operands = 0 : i64, tpu.core_type = #tpu.core_type<tc>, window_params = [{transform_indices = @transform_0, window_bounds = array<i64: 32, 16>}, {pipeline_mode = #tpu.pipeline_mode<synchronous>, transform_indices = @transform_1, window_bounds = array<i64: 16, 8>}, {pipeline_mode = #tpu.pipeline_mode<synchronous>, transform_indices = @transform_2, window_bounds = array<i64: 16, 8>}, {transform_indices = @transform_3, window_bounds = array<i64: 16, 8>}, {transform_indices = @transform_4, window_bounds = array<i64: 2, 3, 8, 8>}]} {
    %c0 = arith.constant 0 : index
    %c0_0 = arith.constant 0 : index
    %0 = tpu.strided_load %arg2[%c0, %c0_0] {strides = array<i32: 2, 1>} : memref<32x16xf32, #tpu.memory_space<vmem>>, vector<16x16xf32>
    %c1 = arith.constant 1 : index
    %c0_1 = arith.constant 0 : index
    %1 = tpu.strided_load %arg2[%c1, %c0_1] {strides = array<i32: 2, 1>} : memref<32x16xf32, #tpu.memory_space<vmem>>, vector<16x16xf32>
    %2 = arith.addf %0, %1 : vector<16x16xf32>
    %cst = arith.constant 0.707106769 : f32
    %3 = vector.broadcast %cst : f32 to vector<16x16xf32>
    %4 = arith.mulf %2, %3 : vector<16x16xf32>
    %5 = arith.subf %0, %1 : vector<16x16xf32>
    %cst_2 = arith.constant 0.707106769 : f32
    %6 = vector.broadcast %cst_2 : f32 to vector<16x16xf32>
    %7 = arith.mulf %5, %6 : vector<16x16xf32>
    %c0_3 = arith.constant 0 : index
    %c0_4 = arith.constant 0 : index
    %8 = vector.load %arg3[%c0_3, %c0_4] : memref<16x8xf32, #tpu.memory_space<vmem>>, vector<16x8xf32>
    %c0_5 = arith.constant 0 : index
    %c0_6 = arith.constant 0 : index
    %9 = vector.load %arg4[%c0_5, %c0_6] : memref<16x8xf32, #tpu.memory_space<vmem>>, vector<16x8xf32>
    %cst_7 = arith.constant dense<0.000000e+00> : vector<16x8xf32>
    %10 = tpu.matmul %4, %8, %cst_7 {dimension_numbers = #tpu.dot_dimension_numbers<[1], [0], [0], [1], [0, 0, 1, 1], [], []>} : vector<16x16xf32>, vector<16x8xf32>, vector<16x8xf32> -> vector<16x8xf32>
    %cst_8 = arith.constant dense<0.000000e+00> : vector<16x8xf32>
    %11 = tpu.matmul %7, %8, %cst_8 {dimension_numbers = #tpu.dot_dimension_numbers<[1], [0], [0], [1], [0, 0, 1, 1], [], []>} : vector<16x16xf32>, vector<16x8xf32>, vector<16x8xf32> -> vector<16x8xf32>
    %cst_9 = arith.constant dense<0.000000e+00> : vector<16x8xf32>
    %12 = tpu.matmul %4, %9, %cst_9 {dimension_numbers = #tpu.dot_dimension_numbers<[1], [0], [0], [1], [0, 0, 1, 1], [], []>} : vector<16x16xf32>, vector<16x8xf32>, vector<16x8xf32> -> vector<16x8xf32>
    %cst_10 = arith.constant dense<0.000000e+00> : vector<16x8xf32>
    %13 = tpu.matmul %7, %9, %cst_10 {dimension_numbers = #tpu.dot_dimension_numbers<[1], [0], [0], [1], [0, 0, 1, 1], [], []>} : vector<16x16xf32>, vector<16x8xf32>, vector<16x8xf32> -> vector<16x8xf32>
    %c0_11 = arith.constant 0 : index
    %c0_12 = arith.constant 0 : index
    %14 = vector.load %arg5[%c0_11, %c0_12] : memref<16x8xf32, #tpu.memory_space<vmem>>, vector<16x8xf32>
    tpu.vector_store %arg5[%c0_11, %c0_12], %10 {strides = array<i32>} : memref<16x8xf32, #tpu.memory_space<vmem>>, vector<16x8xf32>,
    %15 = vector.shape_cast %11 : vector<16x8xf32> to vector<2x8x8xf32>
    %c0_13 = arith.constant 0 : index
    %c0_14 = arith.constant 0 : index
    %c0_15 = arith.constant 0 : index
    %c0_16 = arith.constant 0 : index
    %16 = vector.load %arg6[%c0_13, %c0_14, %c0_15, %c0_16] : memref<2x3x8x8xf32, #tpu.memory_space<vmem>>, vector<2x1x8x8xf32>
    %17 = vector.shape_cast %16 : vector<2x1x8x8xf32> to vector<2x8x8xf32>
    %18 = vector.shape_cast %15 : vector<2x8x8xf32> to vector<2x1x8x8xf32>
    tpu.vector_store %arg6[%c0_13, %c0_14, %c0_15, %c0_16], %18 {strides = array<i32>} : memref<2x3x8x8xf32, #tpu.memory_space<vmem>>, vector<2x1x8x8xf32>,
    %19 = vector.shape_cast %12 : vector<16x8xf32> to vector<2x8x8xf32>
    %c0_17 = arith.constant 0 : index
    %c1_18 = arith.constant 1 : index
    %c0_19 = arith.constant 0 : index
    %c0_20 = arith.constant 0 : index
    %20 = vector.load %arg6[%c0_17, %c1_18, %c0_19, %c0_20] : memref<2x3x8x8xf32, #tpu.memory_space<vmem>>, vector<2x1x8x8xf32>
    %21 = vector.shape_cast %20 : vector<2x1x8x8xf32> to vector<2x8x8xf32>
    %22 = vector.shape_cast %19 : vector<2x8x8xf32> to vector<2x1x8x8xf32>
    tpu.vector_store %arg6[%c0_17, %c1_18, %c0_19, %c0_20], %22 {strides = array<i32>} : memref<2x3x8x8xf32, #tpu.memory_space<vmem>>, vector<2x1x8x8xf32>,
    %23 = vector.shape_cast %13 : vector<16x8xf32> to vector<2x8x8xf32>
    %c0_21 = arith.constant 0 : index
    %c2 = arith.constant 2 : index
    %c0_22 = arith.constant 0 : index
    %c0_23 = arith.constant 0 : index
    %24 = vector.load %arg6[%c0_21, %c2, %c0_22, %c0_23] : memref<2x3x8x8xf32, #tpu.memory_space<vmem>>, vector<2x1x8x8xf32>
    %25 = vector.shape_cast %24 : vector<2x1x8x8xf32> to vector<2x8x8xf32>
    %26 = vector.shape_cast %23 : vector<2x8x8xf32> to vector<2x1x8x8xf32>
    tpu.vector_store %arg6[%c0_21, %c2, %c0_22, %c0_23], %26 {strides = array<i32>} : memref<2x3x8x8xf32, #tpu.memory_space<vmem>>, vector<2x1x8x8xf32>,
    return
  }
  func.func @transform_0(%arg0: i32, %arg1: i32) -> (i32, i32) {
    %c0_i32 = arith.constant 0 : i32
    return %arg0, %arg1 : i32, i32
  }
  func.func @transform_1(%arg0: i32, %arg1: i32) -> (i32, i32) {
    %c0_i32 = arith.constant 0 : i32
    %c0_i32_0 = arith.constant 0 : i32
    %c0_i32_1 = arith.constant 0 : i32
    return %c0_i32, %c0_i32_0 : i32, i32
  }
  func.func @transform_2(%arg0: i32, %arg1: i32) -> (i32, i32) {
    %c0_i32 = arith.constant 0 : i32
    %c0_i32_0 = arith.constant 0 : i32
    %c0_i32_1 = arith.constant 0 : i32
    return %c0_i32, %c0_i32_0 : i32, i32
  }
  func.func @transform_3(%arg0: i32, %arg1: i32) -> (i32, i32) {
    %c0_i32 = arith.constant 0 : i32
    return %arg0, %arg1 : i32, i32
  }
  func.func @transform_4(%arg0: i32, %arg1: i32) -> (i32, i32, i32, i32) {
    %c0_i32 = arith.constant 0 : i32
    %c0_i32_0 = arith.constant 0 : i32
    %c0_i32_1 = arith.constant 0 : i32
    return %arg0, %c0_i32, %c0_i32_0, %arg1 : i32, i32, i32, i32
  }
}

</mosaic_0001>

<llo_original>
// kernel: tpu_custom_call.1
$region0: #{tpu_custom_call.1}
  #allocation0 [shape = 'u32[]', space=smem, size = 0x4, offset = 0x4, fixed_abs, tag = 'smem constant byte address 0x4 - core index']
  #allocation1 [shape = 'u32[144,128]{1,0:T(1,128)}', space=vmem, size = 0x12000, scoped, tag = 'internal scratch']
  %s0 = inlined_call_operand.vmem [shape: f32[128,16], index: 0, kind: input, shape index: {}]
  %s1 = inlined_call_operand.vmem [shape: f32[16,8], index: 1, kind: input, shape index: {}]
  %s2 = inlined_call_operand.vmem [shape: f32[16,8], index: 2, kind: input, shape index: {}]
  %s3 = inlined_call_operand.vmem [shape: f32[64,8], index: 3, kind: output, shape index: {0}]
  %s4 = inlined_call_operand.hbm [shape: f32[8,3,8,8], index: 4, kind: output, shape index: {1}]
  %5 = xla_tuple %s3, %s4
  %s6 = sld [smem:[#allocation0]]
  $region53: #{tpu_custom_call.1} parent=0
    _
  %s8 = ssub.s32 1, %s6
  %s9 = scalar_select 0, %s8, %s6
  $region1: #{tpu_custom_call.1} parent=0
    #allocation2 [shape = 'u8[49152]{0}', space=vmem, size = 0xc000, scoped, tag = 'output window, operand 1']
    #allocation3 [shape = 's32[2]{0}', space=sflag, size = 0x8, scoped, tag = 'scoped memory for tpu_custom_call.1']
    %10 = vsyncpa [#allocation3], 0
    %s11 = scalar_lea.sflag [#allocation3], 1
    %12 = vsyncpa %s11, 0
    loop: start=0, step=1, limit=6
    $region2: #{tpu_custom_call.1} parent=1 // loop_pre_header
      _
    $region3: #{tpu_custom_call.1} parent=1 // loop_header
      %s14 = sphi 0, %s18
      %p15 = scmp.ge.s32.totalorder %s14, 6
      %s21 = sphi 0, %s33
      %s22 = sphi 0, %s29
      %s23 = sphi 0, %s21
      %s24 = sphi 0, %s22
      %s25 = sphi 0, %s23
      %s26 = sphi 0, %s24
      %s38 = sphi 0, %s40
      %s41 = sphi 0, %s38
      %s42 = sphi 0, %s41
      %s58 = sphi 0, %s42
      %s62 = sphi 0, %s62
      %s64 = sphi 0, %s62
      %s65 = sphi 0, %s64
      %s79 = sphi 0, %s65
      %s83 = sphi 0, %s83
      %s85 = sphi 0, %s83
      %s86 = sphi 0, %s85
      %s100 = sphi 0, %s86
      %s108 = sphi 0, %s110
      %s111 = sphi 0, %s108
      %s112 = sphi 0, %s111
      %s128 = sphi 0, %s112
      %s136 = sphi 0, %s138
      %s139 = sphi 0, %s136
      %s140 = sphi 0, %s139
      %s156 = sphi 0, %s140
    $region4: #{tpu_custom_call.1} parent=1 // loop_header_branch
      %17 = sbr.rel (%p15) target = $region8
    $region5: #{tpu_custom_call.1} parent=1 // loop_body
      %s19 = ssub.s32 %s14, 1
      %s20 = ssub.s32 %s14, 2
      %s27 = sadd.s32 1, %s22
      %p28 = scmp.ge.s32.totalorder %s27, 1
      %s29 = scalar_select %p28, 0, %s27
      %s30 = sadd.s32 1, %s21
      %s31 = scalar_select %p28, %s30, %s21
      %p32 = scmp.ge.s32.totalorder %s31, 4
      %s33 = scalar_select %p32, 0, %s31
      %s34 = ssub.s32 %s21, %s33
      %s35 = ssub.s32 %s22, %s29
      %s36 = sor.u32 %s34, %s35
      %p37 = scmp.eq.s32.totalorder %s36, 0
      %s39 = sadd.s32 %s38, 1
      %s40 = scalar_select %p37, %s38, %s39
      %p43 = pneg %p37
      %p44 = scmp.eq.s32.totalorder %s14, 3
      %p45 = por %p43, %p44
      %p46 = scmp.ne.s32.totalorder %s38, %s41
      %p47 = scmp.eq.s32.totalorder %s14, 0
      %p48 = por %p46, %p47
      %p49 = scmp.ne.s32.totalorder %s38, %s41
      %p50 = scmp.eq.s32.totalorder %s19, 3
      %p51 = por %p49, %p50
      %p52 = scmp.ne.s32.totalorder %s41, %s42
      %p53 = scmp.eq.s32.totalorder %s19, 0
      %p54 = por %p52, %p53
      %p55 = scmp.ne.s32.totalorder %s41, %s42
      %p56 = scmp.eq.s32.totalorder %s20, 3
      %p57 = por %p55, %p56
      %p59 = scmp.ne.s32.totalorder %s42, %s58
      %p60 = scmp.eq.s32.totalorder %s20, 0
      %p61 = por %p59, %p60
      %s63 = sadd.s32 %s62, 1
      %p66 = scmp.eq.s32.totalorder %s14, 3
      %p67 = scmp.ne.s32.totalorder %s62, %s64
      %p68 = scmp.eq.s32.totalorder %s14, 0
      %p69 = por %p67, %p68
      %p70 = scmp.ne.s32.totalorder %s62, %s64
      %p71 = scmp.eq.s32.totalorder %s19, 3
      %p72 = por %p70, %p71
      %p73 = scmp.ne.s32.totalorder %s64, %s65
      %p74 = scmp.eq.s32.totalorder %s19, 0
      %p75 = por %p73, %p74
      %p76 = scmp.ne.s32.totalorder %s64, %s65
      %p77 = scmp.eq.s32.totalorder %s20, 3
      %p78 = por %p76, %p77
      %p80 = scmp.ne.s32.totalorder %s65, %s79
      %p81 = scmp.eq.s32.totalorder %s20, 0
      %p82 = por %p80, %p81
      %s84 = sadd.s32 %s83, 1
      %p87 = scmp.eq.s32.totalorder %s14, 3
      %p88 = scmp.ne.s32.totalorder %s83, %s85
      %p89 = scmp.eq.s32.totalorder %s14, 0
      %p90 = por %p88, %p89
      %p91 = scmp.ne.s32.totalorder %s83, %s85
      %p92 = scmp.eq.s32.totalorder %s19, 3
      %p93 = por %p91, %p92
      %p94 = scmp.ne.s32.totalorder %s85, %s86
      %p95 = scmp.eq.s32.totalorder %s19, 0
      %p96 = por %p94, %p95
      %p97 = scmp.ne.s32.totalorder %s85, %s86
      %p98 = scmp.eq.s32.totalorder %s20, 3
      %p99 = por %p97, %p98
      %p101 = scmp.ne.s32.totalorder %s86, %s100
      %p102 = scmp.eq.s32.totalorder %s20, 0
      %p103 = por %p101, %p102
      %s104 = ssub.s32 %s21, %s33
      %s105 = ssub.s32 %s22, %s29
      %s106 = sor.u32 %s104, %s105
      %p107 = scmp.eq.s32.totalorder %s106, 0
      %s109 = sadd.s32 %s108, 1
      %s110 = scalar_select %p107, %s108, %s109
      %p113 = pneg %p107
      %p114 = scmp.eq.s32.totalorder %s14, 3
      %p115 = por %p113, %p114
      %p116 = scmp.ne.s32.totalorder %s108, %s111
      %p117 = scmp.eq.s32.totalorder %s14, 0
      %p118 = por %p116, %p117
      %p119 = scmp.ne.s32.totalorder %s108, %s111
      %p120 = scmp.eq.s32.totalorder %s19, 3
      %p121 = por %p119, %p120
      %p122 = scmp.ne.s32.totalorder %s111, %s112
      %p123 = scmp.eq.s32.totalorder %s19, 0
      %p124 = por %p122, %p123
      %p125 = scmp.ne.s32.totalorder %s111, %s112
      %p126 = scmp.eq.s32.totalorder %s20, 3
      %p127 = por %p125, %p126
      %p129 = scmp.ne.s32.totalorder %s112, %s128
      %p130 = scmp.eq.s32.totalorder %s20, 0
      %p131 = por %p129, %p130
      %s132 = ssub.s32 %s21, %s33
      %s133 = ssub.s32 %s22, %s29
      %s134 = sor.u32 %s132, %s133
      %p135 = scmp.eq.s32.totalorder %s134, 0
      %s137 = sadd.s32 %s136, 1
      %s138 = scalar_select %p135, %s136, %s137
      %p141 = pneg %p135
      %p142 = scmp.eq.s32.totalorder %s14, 3
      %p143 = por %p141, %p142
      %p144 = scmp.ne.s32.totalorder %s136, %s139
      %p145 = scmp.eq.s32.totalorder %s14, 0
      %p146 = por %p144, %p145
      %p147 = scmp.ne.s32.totalorder %s136, %s139
      %p148 = scmp.eq.s32.totalorder %s19, 3
      %p149 = por %p147, %p148
      %p150 = scmp.ne.s32.totalorder %s139, %s140
      %p151 = scmp.eq.s32.totalorder %s19, 0
      %p152 = por %p150, %p151
      %p153 = scmp.ne.s32.totalorder %s139, %s140
      %p154 = scmp.eq.s32.totalorder %s20, 3
      %p155 = por %p153, %p154
      %p157 = scmp.ne.s32.totalorder %s140, %s156
      %p158 = scmp.eq.s32.totalorder %s20, 0
      %p159 = por %p157, %p158
      %p160 = scmp.le.s32.totalorder 1, %s14
      %p161 = scmp.lt.s32.totalorder %s14, 5
      %p162 = pnand %p160, %p161
      %p163 = pneg %p162
      // Predicated region
      $region9: #{tpu_custom_call.1} parent=5 // pred_check
        _
      $region10: #{tpu_custom_call.1} parent=5 // pred_check_branch
        %165 = sbr.rel (%p162) target = $region12
      $region11: #{tpu_custom_call.1} parent=5 // pred_region
        %s166 = ssub.s32 %s14, 1
        // Predicated region
        $region13: #{tpu_custom_call.1} parent=11 // pred_check
          %p167 = pneg %p75
        $region14: #{tpu_custom_call.1} parent=11 // pred_check_branch
          %169 = sbr.rel (%p167) target = $region16
        $region15: #{tpu_custom_call.1} parent=11 // pred_region
          _
        $region16: #{tpu_custom_call.1} parent=11 // pred_fallthru
          _
        // Predicated region
        $region17: #{tpu_custom_call.1} parent=11 // pred_check
          %p170 = pneg %p96
        $region18: #{tpu_custom_call.1} parent=11 // pred_check_branch
          %172 = sbr.rel (%p170) target = $region20
        $region19: #{tpu_custom_call.1} parent=11 // pred_region
          _
        $region20: #{tpu_custom_call.1} parent=11 // pred_fallthru
          _
      $region12: #{tpu_custom_call.1} parent=5 // pred_fallthru
        _
      %p173 = scmp.lt.s32.totalorder %s14, 4
      // Predicated region
      $region21: #{tpu_custom_call.1} parent=5 // pred_check
        %p174 = pneg %p173
      $region22: #{tpu_custom_call.1} parent=5 // pred_check_branch
        %176 = sbr.rel (%p174) target = $region24
      $region23: #{tpu_custom_call.1} parent=5 // pred_region
        // Predicated region
        $region25: #{tpu_custom_call.1} parent=23 // pred_check
          %p177 = pneg %p48
        $region26: #{tpu_custom_call.1} parent=23 // pred_check_branch
          %179 = sbr.rel (%p177) target = $region28
        $region27: #{tpu_custom_call.1} parent=23 // pred_region
          %s180 = smul.u32 4, %s21
          %p181 = scmp.lt.s32.totalorder %s180, 15
          %s182 = scalar_select %p181, %s180, 15
          %p183 = scmp.lt.s32.totalorder %s22, 0
          %s184 = scalar_select %p183, %s22, 0
          %s185 = sadd.s32 %s184, %s182
          %s186 = smul.addr %s185, 8
          %s187 = scalar_lea.vmem %s0, %s186
          %s188 = smul.u32 4, %s21
        $region28: #{tpu_custom_call.1} parent=23 // pred_fallthru
          _
      $region24: #{tpu_custom_call.1} parent=5 // pred_fallthru
        _
      %p189 = scmp.le.s32.totalorder 1, %s14
      %p190 = scmp.lt.s32.totalorder %s14, 5
      %p191 = pnand %p189, %p190
      %p192 = pneg %p191
      // Predicated region
      $region29: #{tpu_custom_call.1} parent=5 // pred_check
        _
      $region30: #{tpu_custom_call.1} parent=5 // pred_check_branch
        %194 = sbr.rel (%p191) target = $region32
      $region31: #{tpu_custom_call.1} parent=5 // pred_region
        %s195 = ssub.s32 %s14, 1
        %s196 = smul.u32 4, %s23
        %p197 = scmp.lt.s32.totalorder %s196, 15
        %s198 = scalar_select %p197, %s196, 15
        %p199 = scmp.lt.s32.totalorder %s24, 0
        %s200 = scalar_select %p199, %s24, 0
        %s201 = sadd.s32 %s200, %s198
        %s202 = smul.addr %s201, 8
        %s203 = scalar_lea.vmem %s0, %s202
        %p204 = pneg %p54
        %p205 = pneg %p51
        %p206 = pneg %p75
        %p207 = pneg %p72
        %p208 = pneg %p96
        %p209 = pneg %p93
        %p210 = pneg %p124
        %p211 = pneg %p121
        %s212 = smul.u32 2, %s23
        %p213 = scmp.lt.s32.totalorder %s212, 7
        %s214 = scalar_select %p213, %s212, 7
        %p215 = scmp.lt.s32.totalorder %s24, 0
        %s216 = scalar_select %p215, %s24, 0
        %s217 = sadd.s32 %s216, %s214
        %s218 = smul.addr %s217, 8
        %s219 = scalar_lea.vmem %s3, %s218
        %p220 = pneg %p152
        %p221 = pneg %p149
        %s222 = sand.u32 %s139, 1
        %s223 = scalar_lea.sflag [#allocation3], %s222
        %s224 = sand.u32 %s139, 1
        %s225 = smul.addr %s224, 48
        %s226 = scalar_lea.vmem [#allocation2], %s225
        %s227 = smul.u32 4, %s23
        %p228 = scmp.lt.s32.totalorder %s227, 15
        %s229 = scalar_select %p228, %s227, 15
        %p230 = scmp.lt.s32.totalorder %s24, 0
        %s231 = scalar_select %p230, %s24, 0
        %s232 = sadd.s32 %s231, %s229
        %s233 = smul.addr %s232, 8
        %s234 = scalar_lea.vmem %s0, %s233
        %s235 = smul.u32 4, %s23
        %s236 = smul.u32 2, %s23
        %p237 = scmp.lt.s32.totalorder %s236, 7
        %s238 = scalar_select %p237, %s236, 7
        %p239 = scmp.lt.s32.totalorder %s24, 0
        %s240 = scalar_select %p239, %s24, 0
        %s241 = sadd.s32 %s240, %s238
        %s242 = smul.addr %s241, 8
        %s243 = scalar_lea.vmem %s3, %s242
        %s244 = smul.u32 2, %s23
        %s245 = smul.u32 2, %s23
        %v246 = vld [vmem:[%s234] ss:$2 sm:$0xff]
        %s247 = scalar_lea.vmem %s234, 16
        %v248 = vld [vmem:[%s247] ss:$2 sm:$0xff]
        %s249 = scalar_lea.vmem %s234, 1
        %v250 = vld [vmem:[%s249] ss:$2 sm:$0xff]
        %s251 = scalar_lea.vmem %s234, 17
        %v252 = vld [vmem:[%s251] ss:$2 sm:$0xff]
        %v253 = vadd.f32 %v246, %v250
        %v254 = vadd.f32 %v248, %v252
        %v255 = vmul.f32 %v253, 0.70710677
        %v256 = vmul.f32 %v254, 0.70710677
        %v257 = vsub.f32 %v246, %v250
        %v258 = vsub.f32 %v248, %v252
        %v259 = vmul.f32 %v257, 0.70710677
        %v260 = vmul.f32 %v258, 0.70710677
        %v261 = vld [vmem:[%s1] sm:$0xff]
        %v262 = vld [vmem:[%s1 + $0x8] sm:$0xff]
        %v263 = vld [vmem:[%s2] sm:$0xff]
        %v264 = vld [vmem:[%s2 + $0x8] sm:$0xff]
        %vm265 = vcmask 130048
        %v267 = vsel %vm265, %v255, 0
        %v270 = vsel %vm265, %v256, 0
        %272 = vmatprep.subr.mxu0 0.0
        %273 = vmatpush1.msra.mxu0 %v261
        %274 = vmatprep.subr.mxu0 0.0
        %275 = vmatpush1.msra.mxu0 %v262
        %276 = vmatprep.subr.mxu0 0.0
        %277 = vmatpush1.msra.mxu0 0.0
        %278 = vmatprep.subr.mxu0 0.0
        %279 = vmatpush1.msra.mxu0 0.0
        %280 = vmatprep.subr.mxu0 0.0
        %281 = vmatpush1.msra.mxu0 0.0
        %282 = vmatprep.subr.mxu0 0.0
        %283 = vmatpush1.msra.mxu0 0.0
        %284 = vmatprep.subr.mxu0 0.0
        %285 = vmatpush1.msra.mxu0 0.0
        %286 = vmatprep.subr.mxu0 0.0
        %287 = vmatpush1.msra.mxu0 0.0
        %288 = vmatprep.subr.mxu0 0.0
        %289 = vmatpush1.msra.mxu0 0.0
        %290 = vmatprep.subr.mxu0 0.0
        %291 = vmatpush1.msra.mxu0 0.0
        %292 = vmatprep.subr.mxu0 0.0
        %293 = vmatpush1.msra.mxu0 0.0
        %294 = vmatprep.subr.mxu0 0.0
        %295 = vmatpush1.msra.mxu0 0.0
        %296 = vmatprep.subr.mxu0 0.0
        %297 = vmatpush1.msra.mxu0 0.0
        %298 = vmatprep.subr.mxu0 0.0
        %299 = vmatpush1.msra.mxu0 0.0
        %300 = vmatprep.subr.mxu0 0.0
        %301 = vmatpush1.msra.mxu0 0.0
        %302 = vmatprep.subr.mxu0 0.0
        %303 = vmatpush1.msra.mxu0 0.0
        %304 = vmatprep.subr.mxu0 0.0
        %305 = vmatpush1.msra.mxu0 0.0
        %306 = vmatprep.subr.mxu0 0.0
        %307 = vmatpush1.msra.mxu0 0.0
        %308 = vmatprep.subr.mxu0 0.0
        %309 = vmatpush1.msra.mxu0 0.0
        %310 = vmatprep.subr.mxu0 0.0
        %311 = vmatpush1.msra.mxu0 0.0
        %312 = vmatprep.subr.mxu0 0.0
        %313 = vmatpush1.msra.mxu0 0.0
        %314 = vmatprep.subr.mxu0 0.0
        %315 = vmatpush1.msra.mxu0 0.0
        %316 = vmatprep.subr.mxu0 0.0
        %317 = vmatpush1.msra.mxu0 0.0
        %318 = vmatprep.subr.mxu0 0.0
        %319 = vmatpush1.msra.mxu0 0.0
        %320 = vmatprep.subr.mxu0 0.0
        %321 = vmatpush1.msra.mxu0 0.0
        %322 = vmatprep.subr.mxu0 0.0
        %323 = vmatpush1.msra.mxu0 0.0
        %324 = vmatprep.subr.mxu0 0.0
        %325 = vmatpush1.msra.mxu0 0.0
        %326 = vmatprep.subr.mxu0 0.0
        %327 = vmatpush1.msra.mxu0 0.0
        %328 = vmatprep.subr.mxu0 0.0
        %329 = vmatpush1.msra.mxu0 0.0
        %330 = vmatprep.subr.mxu0 0.0
        %331 = vmatpush1.msra.mxu0 0.0
        %332 = vmatprep.subr.mxu0 0.0
        %333 = vmatpush1.msra.mxu0 0.0
        %334 = vmatprep.subr.mxu0 0.0
        %335 = vmatpush1.msra.mxu0 0.0
        %336 = vmatprep.mubr.f32.mxu0 0.0
        %337 = vmatmul.mubr.f32.gmra.mrb[0].mxu0 %v267
        %v338 = vpop.f32.mrb[0].mxu0
        %v339 = vadd.f32 0.0, %v338
        %v340 = vpop.f32.mrb[0].mxu0
        %341 = vmatprep.mubr.f32.mxu0 0.0
        %342 = vmatmul.mubr.f32.gmra.mrb[0].mxu0 %v270
        %v343 = vpop.f32.mrb[0].mxu0
        %v344 = vadd.f32 0.0, %v343
        %v345 = vpop.f32.mrb[0].mxu0
        %346 = vdwg.mxu0
        %v348 = vsel %vm265, %v259, 0
        %v351 = vsel %vm265, %v260, 0
        %353 = vmatprep.subr.mxu0 0.0
        %354 = vmatpush1.msra.mxu0 %v261
        %355 = vmatprep.subr.mxu0 0.0
        %356 = vmatpush1.msra.mxu0 %v262
        %357 = vmatprep.subr.mxu0 0.0
        %358 = vmatpush1.msra.mxu0 0.0
        %359 = vmatprep.subr.mxu0 0.0
        %360 = vmatpush1.msra.mxu0 0.0
        %361 = vmatprep.subr.mxu0 0.0
        %362 = vmatpush1.msra.mxu0 0.0
        %363 = vmatprep.subr.mxu0 0.0
        %364 = vmatpush1.msra.mxu0 0.0
        %365 = vmatprep.subr.mxu0 0.0
        %366 = vmatpush1.msra.mxu0 0.0
        %367 = vmatprep.subr.mxu0 0.0
        %368 = vmatpush1.msra.mxu0 0.0
        %369 = vmatprep.subr.mxu0 0.0
        %370 = vmatpush1.msra.mxu0 0.0
        %371 = vmatprep.subr.mxu0 0.0
        %372 = vmatpush1.msra.mxu0 0.0
        %373 = vmatprep.subr.mxu0 0.0
        %374 = vmatpush1.msra.mxu0 0.0
        %375 = vmatprep.subr.mxu0 0.0
        %376 = vmatpush1.msra.mxu0 0.0
        %377 = vmatprep.subr.mxu0 0.0
        %378 = vmatpush1.msra.mxu0 0.0
        %379 = vmatprep.subr.mxu0 0.0
        %380 = vmatpush1.msra.mxu0 0.0
        %381 = vmatprep.subr.mxu0 0.0
        %382 = vmatpush1.msra.mxu0 0.0
        %383 = vmatprep.subr.mxu0 0.0
        %384 = vmatpush1.msra.mxu0 0.0
        %385 = vmatprep.subr.mxu0 0.0
        %386 = vmatpush1.msra.mxu0 0.0
        %387 = vmatprep.subr.mxu0 0.0
        %388 = vmatpush1.msra.mxu0 0.0
        %389 = vmatprep.subr.mxu0 0.0
        %390 = vmatpush1.msra.mxu0 0.0
        %391 = vmatprep.subr.mxu0 0.0
        %392 = vmatpush1.msra.mxu0 0.0
        %393 = vmatprep.subr.mxu0 0.0
        %394 = vmatpush1.msra.mxu0 0.0
        %395 = vmatprep.subr.mxu0 0.0
        %396 = vmatpush1.msra.mxu0 0.0
        %397 = vmatprep.subr.mxu0 0.0
        %398 = vmatpush1.msra.mxu0 0.0
        %399 = vmatprep.subr.mxu0 0.0
        %400 = vmatpush1.msra.mxu0 0.0
        %401 = vmatprep.subr.mxu0 0.0
        %402 = vmatpush1.msra.mxu0 0.0
        %403 = vmatprep.subr.mxu0 0.0
        %404 = vmatpush1.msra.mxu0 0.0
        %405 = vmatprep.subr.mxu0 0.0
        %406 = vmatpush1.msra.mxu0 0.0
        %407 = vmatprep.subr.mxu0 0.0
        %408 = vmatpush1.msra.mxu0 0.0
        %409 = vmatprep.subr.mxu0 0.0
        %410 = vmatpush1.msra.mxu0 0.0
        %411 = vmatprep.subr.mxu0 0.0
        %412 = vmatpush1.msra.mxu0 0.0
        %413 = vmatprep.subr.mxu0 0.0
        %414 = vmatpush1.msra.mxu0 0.0
        %415 = vmatprep.subr.mxu0 0.0
        %416 = vmatpush1.msra.mxu0 0.0
        %417 = vmatprep.mubr.f32.mxu0 0.0
        %418 = vmatmul.mubr.f32.gmra.mrb[0].mxu0 %v348
        %v419 = vpop.f32.mrb[0].mxu0
        %v420 = vadd.f32 0.0, %v419
        %v421 = vpop.f32.mrb[0].mxu0
        %422 = vmatprep.mubr.f32.mxu0 0.0
        %423 = vmatmul.mubr.f32.gmra.mrb[0].mxu0 %v351
        %v424 = vpop.f32.mrb[0].mxu0
        %v425 = vadd.f32 0.0, %v424
        %v426 = vpop.f32.mrb[0].mxu0
        %427 = vdwg.mxu0
        %428 = vmatprep.subr.mxu0 0.0
        %429 = vmatpush1.msra.mxu0 %v263
        %430 = vmatprep.subr.mxu0 0.0
        %431 = vmatpush1.msra.mxu0 %v264
        %432 = vmatprep.subr.mxu0 0.0
        %433 = vmatpush1.msra.mxu0 0.0
        %434 = vmatprep.subr.mxu0 0.0
        %435 = vmatpush1.msra.mxu0 0.0
        %436 = vmatprep.subr.mxu0 0.0
        %437 = vmatpush1.msra.mxu0 0.0
        %438 = vmatprep.subr.mxu0 0.0
        %439 = vmatpush1.msra.mxu0 0.0
        %440 = vmatprep.subr.mxu0 0.0
        %441 = vmatpush1.msra.mxu0 0.0
        %442 = vmatprep.subr.mxu0 0.0
        %443 = vmatpush1.msra.mxu0 0.0
        %444 = vmatprep.subr.mxu0 0.0
        %445 = vmatpush1.msra.mxu0 0.0
        %446 = vmatprep.subr.mxu0 0.0
        %447 = vmatpush1.msra.mxu0 0.0
        %448 = vmatprep.subr.mxu0 0.0
        %449 = vmatpush1.msra.mxu0 0.0
        %450 = vmatprep.subr.mxu0 0.0
        %451 = vmatpush1.msra.mxu0 0.0
        %452 = vmatprep.subr.mxu0 0.0
        %453 = vmatpush1.msra.mxu0 0.0
        %454 = vmatprep.subr.mxu0 0.0
        %455 = vmatpush1.msra.mxu0 0.0
        %456 = vmatprep.subr.mxu0 0.0
        %457 = vmatpush1.msra.mxu0 0.0
        %458 = vmatprep.subr.mxu0 0.0
        %459 = vmatpush1.msra.mxu0 0.0
        %460 = vmatprep.subr.mxu0 0.0
        %461 = vmatpush1.msra.mxu0 0.0
        %462 = vmatprep.subr.mxu0 0.0
        %463 = vmatpush1.msra.mxu0 0.0
        %464 = vmatprep.subr.mxu0 0.0
        %465 = vmatpush1.msra.mxu0 0.0
        %466 = vmatprep.subr.mxu0 0.0
        %467 = vmatpush1.msra.mxu0 0.0
        %468 = vmatprep.subr.mxu0 0.0
        %469 = vmatpush1.msra.mxu0 0.0
        %470 = vmatprep.subr.mxu0 0.0
        %471 = vmatpush1.msra.mxu0 0.0
        %472 = vmatprep.subr.mxu0 0.0
        %473 = vmatpush1.msra.mxu0 0.0
        %474 = vmatprep.subr.mxu0 0.0
        %475 = vmatpush1.msra.mxu0 0.0
        %476 = vmatprep.subr.mxu0 0.0
        %477 = vmatpush1.msra.mxu0 0.0
        %478 = vmatprep.subr.mxu0 0.0
        %479 = vmatpush1.msra.mxu0 0.0
        %480 = vmatprep.subr.mxu0 0.0
        %481 = vmatpush1.msra.mxu0 0.0
        %482 = vmatprep.subr.mxu0 0.0
        %483 = vmatpush1.msra.mxu0 0.0
        %484 = vmatprep.subr.mxu0 0.0
        %485 = vmatpush1.msra.mxu0 0.0
        %486 = vmatprep.subr.mxu0 0.0
        %487 = vmatpush1.msra.mxu0 0.0
        %488 = vmatprep.subr.mxu0 0.0
        %489 = vmatpush1.msra.mxu0 0.0
        %490 = vmatprep.subr.mxu0 0.0
        %491 = vmatpush1.msra.mxu0 0.0
        %492 = vmatprep.mubr.f32.mxu0 0.0
        %493 = vmatmul.mubr.f32.gmra.mrb[0].mxu0 %v267
        %v494 = vpop.f32.mrb[0].mxu0
        %v495 = vadd.f32 0.0, %v494
        %v496 = vpop.f32.mrb[0].mxu0
        %497 = vmatprep.mubr.f32.mxu0 0.0
        %498 = vmatmul.mubr.f32.gmra.mrb[0].mxu0 %v270
        %v499 = vpop.f32.mrb[0].mxu0
        %v500 = vadd.f32 0.0, %v499
        %v501 = vpop.f32.mrb[0].mxu0
        %502 = vdwg.mxu0
        %503 = vmatprep.subr.mxu0 0.0
        %504 = vmatpush1.msra.mxu0 %v263
        %505 = vmatprep.subr.mxu0 0.0
        %506 = vmatpush1.msra.mxu0 %v264
        %507 = vmatprep.subr.mxu0 0.0
        %508 = vmatpush1.msra.mxu0 0.0
        %509 = vmatprep.subr.mxu0 0.0
        %510 = vmatpush1.msra.mxu0 0.0
        %511 = vmatprep.subr.mxu0 0.0
        %512 = vmatpush1.msra.mxu0 0.0
        %513 = vmatprep.subr.mxu0 0.0
        %514 = vmatpush1.msra.mxu0 0.0
        %515 = vmatprep.subr.mxu0 0.0
        %516 = vmatpush1.msra.mxu0 0.0
        %517 = vmatprep.subr.mxu0 0.0
        %518 = vmatpush1.msra.mxu0 0.0
        %519 = vmatprep.subr.mxu0 0.0
        %520 = vmatpush1.msra.mxu0 0.0
        %521 = vmatprep.subr.mxu0 0.0
        %522 = vmatpush1.msra.mxu0 0.0
        %523 = vmatprep.subr.mxu0 0.0
        %524 = vmatpush1.msra.mxu0 0.0
        %525 = vmatprep.subr.mxu0 0.0
        %526 = vmatpush1.msra.mxu0 0.0
        %527 = vmatprep.subr.mxu0 0.0
        %528 = vmatpush1.msra.mxu0 0.0
        %529 = vmatprep.subr.mxu0 0.0
        %530 = vmatpush1.msra.mxu0 0.0
        %531 = vmatprep.subr.mxu0 0.0
        %532 = vmatpush1.msra.mxu0 0.0
        %533 = vmatprep.subr.mxu0 0.0
        %534 = vmatpush1.msra.mxu0 0.0
        %535 = vmatprep.subr.mxu0 0.0
        %536 = vmatpush1.msra.mxu0 0.0
        %537 = vmatprep.subr.mxu0 0.0
        %538 = vmatpush1.msra.mxu0 0.0
        %539 = vmatprep.subr.mxu0 0.0
        %540 = vmatpush1.msra.mxu0 0.0
        %541 = vmatprep.subr.mxu0 0.0
        %542 = vmatpush1.msra.mxu0 0.0
        %543 = vmatprep.subr.mxu0 0.0
        %544 = vmatpush1.msra.mxu0 0.0
        %545 = vmatprep.subr.mxu0 0.0
        %546 = vmatpush1.msra.mxu0 0.0
        %547 = vmatprep.subr.mxu0 0.0
        %548 = vmatpush1.msra.mxu0 0.0
        %549 = vmatprep.subr.mxu0 0.0
        %550 = vmatpush1.msra.mxu0 0.0
        %551 = vmatprep.subr.mxu0 0.0
        %552 = vmatpush1.msra.mxu0 0.0
        %553 = vmatprep.subr.mxu0 0.0
        %554 = vmatpush1.msra.mxu0 0.0
        %555 = vmatprep.subr.mxu0 0.0
        %556 = vmatpush1.msra.mxu0 0.0
        %557 = vmatprep.subr.mxu0 0.0
        %558 = vmatpush1.msra.mxu0 0.0
        %559 = vmatprep.subr.mxu0 0.0
        %560 = vmatpush1.msra.mxu0 0.0
        %561 = vmatprep.subr.mxu0 0.0
        %562 = vmatpush1.msra.mxu0 0.0
        %563 = vmatprep.subr.mxu0 0.0
        %564 = vmatpush1.msra.mxu0 0.0
        %565 = vmatprep.subr.mxu0 0.0
        %566 = vmatpush1.msra.mxu0 0.0
        %567 = vmatprep.mubr.f32.mxu0 0.0
        %568 = vmatmul.mubr.f32.gmra.mrb[0].mxu0 %v348
        %v569 = vpop.f32.mrb[0].mxu0
        %v570 = vadd.f32 0.0, %v569
        %v571 = vpop.f32.mrb[0].mxu0
        %572 = vmatprep.mubr.f32.mxu0 0.0
        %573 = vmatmul.mubr.f32.gmra.mrb[0].mxu0 %v351
        %v574 = vpop.f32.mrb[0].mxu0
        %v575 = vadd.f32 0.0, %v574
        %v576 = vpop.f32.mrb[0].mxu0
        %577 = vdwg.mxu0
        %vm578 = vcmask 64512
        %579 = vst.msk [vmem:[%s243] sm:$0xff] %vm578, %v339
        %580 = vst.msk [vmem:[%s243 + $0x8] sm:$0xff] %vm578, %v344
        %581 = vst.msk [vmem:[%s226] sm:$0xff] %vm578, %v420
        %582 = vst.msk [vmem:[%s226 + $0x18] sm:$0xff] %vm578, %v425
        %s583 = scalar_lea.vmem %s226, 8 [#allocation2]
        %584 = vst.msk [vmem:[%s583] sm:$0xff] %vm578, %v495
        %585 = vst.msk [vmem:[%s583 + $0x18] sm:$0xff] %vm578, %v500
        %s586 = scalar_lea.vmem %s226, 16 [#allocation2]
        %587 = vst.msk [vmem:[%s586] sm:$0xff] %vm578, %v570
        %588 = vst.msk [vmem:[%s586 + $0x18] sm:$0xff] %vm578, %v575
        %s589 = smul.u32 2, %s23
        %p590 = scmp.lt.s32.totalorder %s589, 7
        %s591 = scalar_select %p590, %s589, 7
        %p592 = scmp.lt.s32.totalorder %s24, 0
        %s593 = scalar_select %p592, %s24, 0
        %s594 = sadd.s32 %s593, %s591
        %s595 = smul.addr %s594, 8
        %s596 = scalar_lea.vmem %s3, %s595
        %s597 = sand.u32 %s139, 1
        %s598 = scalar_lea.sflag [#allocation3], %s597
        %s599 = sand.u32 %s139, 1
        %s600 = smul.addr %s599, 48
        %s601 = scalar_lea.vmem [#allocation2], %s600
        // Predicated region
        $region33: #{tpu_custom_call.1} parent=31 // pred_check
          %p602 = pneg %p121
        $region34: #{tpu_custom_call.1} parent=31 // pred_check_branch
          %604 = sbr.rel (%p602) target = $region36
        $region35: #{tpu_custom_call.1} parent=31 // pred_region
          %s605 = smul.u32 2, %s23
        $region36: #{tpu_custom_call.1} parent=31 // pred_fallthru
          _
        // Predicated region
        $region37: #{tpu_custom_call.1} parent=31 // pred_check
          %p606 = pneg %p149
        $region38: #{tpu_custom_call.1} parent=31 // pred_check_branch
          %608 = sbr.rel (%p606) target = $region40
        $region39: #{tpu_custom_call.1} parent=31 // pred_region
          %s609 = smul.u32 2, %s23
          %s611 = ssub.s32 768, 768
          %612 = vsyncadd %s598, %s611
          %s613 = smul.addr %s609, 3
          %s614 = sadd.s32 %s24, %s613
          %s615 = smul.addr %s614, 128
          %s616 = scalar_lea.hbm %s4, %s615
          %s617 = sshll.u32 %s601, 4
          %s618 = int_to_ptr.vmem [resolvable:$true] %s617
          %623 = dma.vmem_to_hbm [thread:$0]  %s618, 768, %s616, %s598, 128, 128, 8
        $region40: #{tpu_custom_call.1} parent=31 // pred_fallthru
          _
      $region32: #{tpu_custom_call.1} parent=5 // pred_fallthru
        _
      %p624 = scmp.le.s32.totalorder 2, %s14
      // Predicated region
      $region41: #{tpu_custom_call.1} parent=5 // pred_check
        %p625 = pneg %p624
      $region42: #{tpu_custom_call.1} parent=5 // pred_check_branch
        %627 = sbr.rel (%p625) target = $region44
      $region43: #{tpu_custom_call.1} parent=5 // pred_region
        %s628 = ssub.s32 %s14, 2
        // Predicated region
        $region45: #{tpu_custom_call.1} parent=43 // pred_check
          %p629 = pneg %p127
        $region46: #{tpu_custom_call.1} parent=43 // pred_check_branch
          %631 = sbr.rel (%p629) target = $region48
        $region47: #{tpu_custom_call.1} parent=43 // pred_region
          %s632 = smul.u32 2, %s25
          %p633 = scmp.lt.s32.totalorder %s632, 7
          %s634 = scalar_select %p633, %s632, 7
          %p635 = scmp.lt.s32.totalorder %s26, 0
          %s636 = scalar_select %p635, %s26, 0
          %s637 = sadd.s32 %s636, %s634
          %s638 = smul.addr %s637, 8
          %s639 = scalar_lea.vmem %s3, %s638
        $region48: #{tpu_custom_call.1} parent=43 // pred_fallthru
          _
        // Predicated region
        $region49: #{tpu_custom_call.1} parent=43 // pred_check
          %p640 = pneg %p155
        $region50: #{tpu_custom_call.1} parent=43 // pred_check_branch
          %642 = sbr.rel (%p640) target = $region52
        $region51: #{tpu_custom_call.1} parent=43 // pred_region
          %s643 = sand.u32 %s140, 1
          %s644 = scalar_lea.sflag [#allocation3], %s643
          %s645 = sand.u32 %s140, 1
          %s646 = smul.addr %s645, 48
          %s647 = scalar_lea.vmem [#allocation2], %s646
          %648 = dma.done %s644, 768
        $region52: #{tpu_custom_call.1} parent=43 // pred_fallthru
          _
      $region44: #{tpu_custom_call.1} parent=5 // pred_fallthru
        _
    $region6: #{tpu_custom_call.1} parent=1 // loop_footer
      %s18 = sadd.s32 1, %s14
    $region7: #{tpu_custom_call.1} parent=1 // loop_footer_branch
      %13 = sbr.rel target = $region3
    $region8: #{tpu_custom_call.1} parent=1 // loop_exit
      _
    %649 = vsyncpa [#allocation3], 1
    %s650 = scalar_lea.sflag [#allocation3], 1
    %651 = vsyncpa %s650, 1

</llo_original>
